<compile_context>
chip_gen: v6e
topology: v6e:2x2x1
jax: 0.10.0
libtpu: 0.0.40
codegen_flags: <defaults>
</compile_context>

<pallas_src>
import jax
import jax.numpy as jnp
from jax.experimental import pallas as pl

H, W = 14, 14
HW = H * W                      # 196 flattened spatial positions
CIN, COUT = 128, 32
KH, KW = 3, 3


def conv3x3_kernel(x_ref, w_ref, o_ref):
    # x_ref : (CIN, HW)           channel-major flattened input (unshifted, unpadded)
    # w_ref : (KH*KW*COUT, CIN)   flat packed taps; rows [t*COUT:(t+1)*COUT] = tap t
    # o_ref : (COUT, HW)          channel-major flattened output (lane-dense)

    # Single MXU op: (288, 128) @ (128, 196) -> (288, 196) f32.
    p_all = jnp.dot(w_ref[...], x_ref[...], preferred_element_type=jnp.float32)

    # Column masks in the q (flat input index) frame: a +/-1 column tap scattered from
    # input column 0 / W-1 would wrap into the neighbouring image row; drop those lanes.
    # (Scatter offsets differ per dh, so the 3 taps of a dw-group cannot be summed before
    #  masking; one select per dw=+/-1 tap is the minimum here and is cheap VALU work.)
    colq = jax.lax.broadcasted_iota(jnp.int32, (COUT, HW), 1) % W
    ok_dw_p1 = colq != 0          # tap dw = +1: a contribution from q%W == 0 is a row wrap
    ok_dw_m1 = colq != W - 1      # tap dw = -1: a contribution from q%W == W-1 is a row wrap

    # Tap (dh, dw) with flat shift s = dh*W + dw contributes P_t[:, q] to output p = q - s.
    # Clipping p to [0, HW) implements the zero padding of out-of-image rows; the lane
    # masks above remove the column-wrap contamination of the dw=+/-1 taps.
    o_ref[...] = jnp.zeros_like(o_ref)
    for dh in (-1, 0, 1):
        for dw in (-1, 0, 1):
            t = (dh + 1) * KW + (dw + 1)
            s = dh * W + dw
            part = p_all[t * COUT:(t + 1) * COUT, :]           # (32, 196), sublane-aligned
            if dw == 1:
                part = jnp.where(ok_dw_p1, part, 0.0)
            elif dw == -1:
                part = jnp.where(ok_dw_m1, part, 0.0)
            if s >= 0:
                p0, q0, n = 0, s, HW - s
            else:
                p0, q0, n = -s, 0, HW + s
            o_ref[:, p0:p0 + n] += part[:, q0:q0 + n]


def pack_weights(w_oihw):
    """OIHW (COUT, CIN, KH, KW) -> flat (KH*KW*COUT, CIN).  Run ONCE at load time."""
    return jnp.transpose(w_oihw, (2, 3, 0, 1)).reshape(KH * KW * COUT, CIN)


@jax.jit
def conv2d92(x_nchw, w_packed):
    # x_nchw: (1, CIN, H, W) f32 ; w_packed: (KH*KW*COUT, CIN) f32 (pre-packed once).
    assert x_nchw.shape == (1, CIN, H, W), "kernel assumes batch == 1"
    x_flat = x_nchw.reshape(CIN, HW)                 # free reshape, no extra launch
    out_flat = pl.pallas_call(
        conv3x3_kernel,
        out_shape=jax.ShapeDtypeStruct((COUT, HW), jnp.float32),
        in_specs=[
            pl.BlockSpec((CIN, HW), lambda: (0, 0)),
            pl.BlockSpec((KH * KW * COUT, CIN), lambda: (0, 0)),
        ],
        out_specs=pl.BlockSpec((COUT, HW), lambda: (0, 0)),
    )(x_flat, w_packed)
    return out_flat.reshape(1, COUT, H, W)           # free reshape back to NCHW


if __name__ == "__main__":
    key = jax.random.PRNGKey(0)
    kx, kw = jax.random.split(key)

    # Deterministic synthetic input / weight matching the module shapes.
    x328 = jax.random.normal(kx, (1, CIN, H, W), dtype=jnp.float32)
    fan_in = CIN * KH * KW
    bound = 1.0 / (fan_in ** 0.5)
    w_oihw = jax.random.uniform(kw, (COUT, CIN, KH, KW), dtype=jnp.float32,
                                minval=-bound, maxval=bound)

    # One-time weight packing (hoisted out of the per-call path).
    w_packed = jax.block_until_ready(pack_weights(w_oihw))

    out = jax.block_until_ready(conv2d92(x328, w_packed))

    # Cross-check against XLA's conv for correctness.
    ref = jax.lax.conv_general_dilated(
        x328, w_oihw, window_strides=(1, 1), padding=((1, 1), (1, 1)),
        dimension_numbers=("NCHW", "OIHW", "NCHW"))
    assert out.shape == (1, COUT, H, W)
    assert jnp.allclose(out, ref, atol=1e-4, rtol=1e-4)

    print("KERNEL_OK")
</pallas_src>

<mosaic_0001>
module attributes {stable_mosaic.version = 11 : i64} {
  func.func @conv3x3_kernel(%arg0: memref<128x196xf32, #tpu.memory_space<vmem>>, %arg1: memref<288x128xf32, #tpu.memory_space<vmem>>, %arg2: memref<32x196xf32, #tpu.memory_space<vmem>>) attributes {dimension_semantics = [], scalar_prefetch = 0 : i64, scratch_operands = 0 : i64, tpu.core_type = #tpu.core_type<tc>} {
    %c0 = arith.constant 0 : index
    %c0_0 = arith.constant 0 : index
    %0 = vector.load %arg1[%c0, %c0_0] : memref<288x128xf32, #tpu.memory_space<vmem>>, vector<288x128xf32>
    %c0_1 = arith.constant 0 : index
    %c0_2 = arith.constant 0 : index
    %1 = vector.load %arg0[%c0_1, %c0_2] : memref<128x196xf32, #tpu.memory_space<vmem>>, vector<128x196xf32>
    %cst = arith.constant dense<0.000000e+00> : vector<288x196xf32>
    %2 = tpu.matmul %0, %1, %cst {dimension_numbers = #tpu.dot_dimension_numbers<[1], [0], [0], [1], [0, 0, 1, 1], [], []>} : vector<288x128xf32>, vector<128x196xf32>, vector<288x196xf32> -> vector<288x196xf32>
    %3 = tpu.iota {dimensions = array<i32: 1>} : vector<32x196xi32>
    %c14_i32 = arith.constant 14 : i32
    %c0_i32 = arith.constant 0 : i32
    %4 = arith.cmpi eq, %c14_i32, %c0_i32 : i32
    %c1_i32 = arith.constant 1 : i32
    %5 = arith.select %4, %c1_i32, %c14_i32 : i32
    %6 = vector.broadcast %5 : i32 to vector<32x196xi32>
    %7 = arith.remsi %3, %6 : vector<32x196xi32>
    %c0_i32_3 = arith.constant 0 : i32
    %8 = vector.broadcast %c0_i32_3 : i32 to vector<32x196xi32>
    %9 = arith.cmpi ne, %7, %8 : vector<32x196xi32>
    %c0_i32_4 = arith.constant 0 : i32
    %10 = vector.broadcast %c0_i32_4 : i32 to vector<32x196xi32>
    %11 = arith.cmpi slt, %7, %10 : vector<32x196xi32>
    %c0_i32_5 = arith.constant 0 : i32
    %12 = arith.cmpi slt, %5, %c0_i32_5 : i32
    %13 = vector.broadcast %12 : i1 to vector<32x196xi1>
    %14 = vector.broadcast %13 : vector<32x196xi1> to vector<32x196xi1>
    %15 = arith.xori %11, %14 : vector<32x196xi1>
    %16 = arith.andi %15, %9 : vector<32x196xi1>
    %17 = vector.broadcast %5 : i32 to vector<32x196xi32>
    %18 = arith.addi %7, %17 : vector<32x196xi32>
    %19 = arith.select %16, %18, %7 : vector<32x196xi1>, vector<32x196xi32>
    %c0_i32_6 = arith.constant 0 : i32
    %20 = vector.broadcast %c0_i32_6 : i32 to vector<32x196xi32>
    %21 = arith.cmpi ne, %19, %20 : vector<32x196xi32>
    %c13_i32 = arith.constant 13 : i32
    %22 = vector.broadcast %c13_i32 : i32 to vector<32x196xi32>
    %23 = arith.cmpi ne, %19, %22 : vector<32x196xi32>
    %cst_7 = arith.constant 0.000000e+00 : f32
    %24 = vector.broadcast %cst_7 : f32 to vector<32x196xf32>
    %c0_8 = arith.constant 0 : index
    %c0_9 = arith.constant 0 : index
    %25 = vector.load %arg2[%c0_8, %c0_9] : memref<32x196xf32, #tpu.memory_space<vmem>>, vector<32x196xf32>
    tpu.vector_store %arg2[%c0_8, %c0_9], %24 {strides = array<i32>} : memref<32x196xf32, #tpu.memory_space<vmem>>, vector<32x196xf32>,
    %26 = vector.extract_strided_slice %2 {offsets = [0, 0], sizes = [32, 196], strides = [1, 1]} : vector<288x196xf32> to vector<32x196xf32>
    %cst_10 = arith.constant 0.000000e+00 : f32
    %27 = vector.broadcast %cst_10 : f32 to vector<32x196xf32>
    %28 = arith.select %23, %26, %27 : vector<32x196xi1>, vector<32x196xf32>
    %c0_11 = arith.constant 0 : index
    %c15 = arith.constant 15 : index
    %29 = vector.load %arg2[%c0_11, %c15] : memref<32x196xf32, #tpu.memory_space<vmem>>, vector<32x181xf32>
    %30 = vector.extract_strided_slice %28 {offsets = [0, 0], sizes = [32, 181], strides = [1, 1]} : vector<32x196xf32> to vector<32x181xf32>
    %31 = arith.addf %29, %30 : vector<32x181xf32>
    %c0_12 = arith.constant 0 : index
    %c15_13 = arith.constant 15 : index
    %32 = vector.load %arg2[%c0_12, %c15_13] : memref<32x196xf32, #tpu.memory_space<vmem>>, vector<32x181xf32>
    tpu.vector_store %arg2[%c0_12, %c15_13], %31 {strides = array<i32>} : memref<32x196xf32, #tpu.memory_space<vmem>>, vector<32x181xf32>,
    %33 = vector.extract_strided_slice %2 {offsets = [32, 0], sizes = [32, 196], strides = [1, 1]} : vector<288x196xf32> to vector<32x196xf32>
    %c0_14 = arith.constant 0 : index
    %c14 = arith.constant 14 : index
    %34 = vector.load %arg2[%c0_14, %c14] : memref<32x196xf32, #tpu.memory_space<vmem>>, vector<32x182xf32>
    %35 = vector.extract_strided_slice %33 {offsets = [0, 0], sizes = [32, 182], strides = [1, 1]} : vector<32x196xf32> to vector<32x182xf32>
    %36 = arith.addf %34, %35 : vector<32x182xf32>
    %c0_15 = arith.constant 0 : index
    %c14_16 = arith.constant 14 : index
    %37 = vector.load %arg2[%c0_15, %c14_16] : memref<32x196xf32, #tpu.memory_space<vmem>>, vector<32x182xf32>
    tpu.vector_store %arg2[%c0_15, %c14_16], %36 {strides = array<i32>} : memref<32x196xf32, #tpu.memory_space<vmem>>, vector<32x182xf32>,
    %38 = vector.extract_strided_slice %2 {offsets = [64, 0], sizes = [32, 196], strides = [1, 1]} : vector<288x196xf32> to vector<32x196xf32>
    %cst_17 = arith.constant 0.000000e+00 : f32
    %39 = vector.broadcast %cst_17 : f32 to vector<32x196xf32>
    %40 = arith.select %21, %38, %39 : vector<32x196xi1>, vector<32x196xf32>
    %c0_18 = arith.constant 0 : index
    %c13 = arith.constant 13 : index
    %41 = vector.load %arg2[%c0_18, %c13] : memref<32x196xf32, #tpu.memory_space<vmem>>, vector<32x183xf32>
    %42 = vector.extract_strided_slice %40 {offsets = [0, 0], sizes = [32, 183], strides = [1, 1]} : vector<32x196xf32> to vector<32x183xf32>
    %43 = arith.addf %41, %42 : vector<32x183xf32>
    %c0_19 = arith.constant 0 : index
    %c13_20 = arith.constant 13 : index
    %44 = vector.load %arg2[%c0_19, %c13_20] : memref<32x196xf32, #tpu.memory_space<vmem>>, vector<32x183xf32>
    tpu.vector_store %arg2[%c0_19, %c13_20], %43 {strides = array<i32>} : memref<32x196xf32, #tpu.memory_space<vmem>>, vector<32x183xf32>,
    %45 = vector.extract_strided_slice %2 {offsets = [96, 0], sizes = [32, 196], strides = [1, 1]} : vector<288x196xf32> to vector<32x196xf32>
    %cst_21 = arith.constant 0.000000e+00 : f32
    %46 = vector.broadcast %cst_21 : f32 to vector<32x196xf32>
    %47 = arith.select %23, %45, %46 : vector<32x196xi1>, vector<32x196xf32>
    %c0_22 = arith.constant 0 : index
    %c1 = arith.constant 1 : index
    %48 = vector.load %arg2[%c0_22, %c1] : memref<32x196xf32, #tpu.memory_space<vmem>>, vector<32x195xf32>
    %49 = vector.extract_strided_slice %47 {offsets = [0, 0], sizes = [32, 195], strides = [1, 1]} : vector<32x196xf32> to vector<32x195xf32>
    %50 = arith.addf %48, %49 : vector<32x195xf32>
    %c0_23 = arith.constant 0 : index
    %c1_24 = arith.constant 1 : index
    %51 = vector.load %arg2[%c0_23, %c1_24] : memref<32x196xf32, #tpu.memory_space<vmem>>, vector<32x195xf32>
    tpu.vector_store %arg2[%c0_23, %c1_24], %50 {strides = array<i32>} : memref<32x196xf32, #tpu.memory_space<vmem>>, vector<32x195xf32>,
    %52 = vector.extract_strided_slice %2 {offsets = [128, 0], sizes = [32, 196], strides = [1, 1]} : vector<288x196xf32> to vector<32x196xf32>
    %c0_25 = arith.constant 0 : index
    %c0_26 = arith.constant 0 : index
    %53 = vector.load %arg2[%c0_25, %c0_26] : memref<32x196xf32, #tpu.memory_space<vmem>>, vector<32x196xf32>
    %54 = arith.addf %53, %52 : vector<32x196xf32>
    %c0_27 = arith.constant 0 : index
    %c0_28 = arith.constant 0 : index
    %55 = vector.load %arg2[%c0_27, %c0_28] : memref<32x196xf32, #tpu.memory_space<vmem>>, vector<32x196xf32>
    tpu.vector_store %arg2[%c0_27, %c0_28], %54 {strides = array<i32>} : memref<32x196xf32, #tpu.memory_space<vmem>>, vector<32x196xf32>,
    %56 = vector.extract_strided_slice %2 {offsets = [160, 0], sizes = [32, 196], strides = [1, 1]} : vector<288x196xf32> to vector<32x196xf32>
    %cst_29 = arith.constant 0.000000e+00 : f32
    %57 = vector.broadcast %cst_29 : f32 to vector<32x196xf32>
    %58 = arith.select %21, %56, %57 : vector<32x196xi1>, vector<32x196xf32>
    %c0_30 = arith.constant 0 : index
    %c0_31 = arith.constant 0 : index
    %59 = vector.load %arg2[%c0_30, %c0_31] : memref<32x196xf32, #tpu.memory_space<vmem>>, vector<32x195xf32>
    %60 = vector.extract_strided_slice %58 {offsets = [0, 1], sizes = [32, 195], strides = [1, 1]} : vector<32x196xf32> to vector<32x195xf32>
    %61 = arith.addf %59, %60 : vector<32x195xf32>
    %c0_32 = arith.constant 0 : index
    %c0_33 = arith.constant 0 : index
    %62 = vector.load %arg2[%c0_32, %c0_33] : memref<32x196xf32, #tpu.memory_space<vmem>>, vector<32x195xf32>
    tpu.vector_store %arg2[%c0_32, %c0_33], %61 {strides = array<i32>} : memref<32x196xf32, #tpu.memory_space<vmem>>, vector<32x195xf32>,
    %63 = vector.extract_strided_slice %2 {offsets = [192, 0], sizes = [32, 196], strides = [1, 1]} : vector<288x196xf32> to vector<32x196xf32>
    %cst_34 = arith.constant 0.000000e+00 : f32
    %64 = vector.broadcast %cst_34 : f32 to vector<32x196xf32>
    %65 = arith.select %23, %63, %64 : vector<32x196xi1>, vector<32x196xf32>
    %c0_35 = arith.constant 0 : index
    %c0_36 = arith.constant 0 : index
    %66 = vector.load %arg2[%c0_35, %c0_36] : memref<32x196xf32, #tpu.memory_space<vmem>>, vector<32x183xf32>
    %67 = vector.extract_strided_slice %65 {offsets = [0, 13], sizes = [32, 183], strides = [1, 1]} : vector<32x196xf32> to vector<32x183xf32>
    %68 = arith.addf %66, %67 : vector<32x183xf32>
    %c0_37 = arith.constant 0 : index
    %c0_38 = arith.constant 0 : index
    %69 = vector.load %arg2[%c0_37, %c0_38] : memref<32x196xf32, #tpu.memory_space<vmem>>, vector<32x183xf32>
    tpu.vector_store %arg2[%c0_37, %c0_38], %68 {strides = array<i32>} : memref<32x196xf32, #tpu.memory_space<vmem>>, vector<32x183xf32>,
    %70 = vector.extract_strided_slice %2 {offsets = [224, 0], sizes = [32, 196], strides = [1, 1]} : vector<288x196xf32> to vector<32x196xf32>
    %c0_39 = arith.constant 0 : index
    %c0_40 = arith.constant 0 : index
    %71 = vector.load %arg2[%c0_39, %c0_40] : memref<32x196xf32, #tpu.memory_space<vmem>>, vector<32x182xf32>
    %72 = vector.extract_strided_slice %70 {offsets = [0, 14], sizes = [32, 182], strides = [1, 1]} : vector<32x196xf32> to vector<32x182xf32>
    %73 = arith.addf %71, %72 : vector<32x182xf32>
    %c0_41 = arith.constant 0 : index
    %c0_42 = arith.constant 0 : index
    %74 = vector.load %arg2[%c0_41, %c0_42] : memref<32x196xf32, #tpu.memory_space<vmem>>, vector<32x182xf32>
    tpu.vector_store %arg2[%c0_41, %c0_42], %73 {strides = array<i32>} : memref<32x196xf32, #tpu.memory_space<vmem>>, vector<32x182xf32>,
    %75 = vector.extract_strided_slice %2 {offsets = [256, 0], sizes = [32, 196], strides = [1, 1]} : vector<288x196xf32> to vector<32x196xf32>
    %cst_43 = arith.constant 0.000000e+00 : f32
    %76 = vector.broadcast %cst_43 : f32 to vector<32x196xf32>
    %77 = arith.select %21, %75, %76 : vector<32x196xi1>, vector<32x196xf32>
    %c0_44 = arith.constant 0 : index
    %c0_45 = arith.constant 0 : index
    %78 = vector.load %arg2[%c0_44, %c0_45] : memref<32x196xf32, #tpu.memory_space<vmem>>, vector<32x181xf32>
    %79 = vector.extract_strided_slice %77 {offsets = [0, 15], sizes = [32, 181], strides = [1, 1]} : vector<32x196xf32> to vector<32x181xf32>
    %80 = arith.addf %78, %79 : vector<32x181xf32>
    %c0_46 = arith.constant 0 : index
    %c0_47 = arith.constant 0 : index
    %81 = vector.load %arg2[%c0_46, %c0_47] : memref<32x196xf32, #tpu.memory_space<vmem>>, vector<32x181xf32>
    tpu.vector_store %arg2[%c0_46, %c0_47], %80 {strides = array<i32>} : memref<32x196xf32, #tpu.memory_space<vmem>>, vector<32x181xf32>,
    return
  }
}

</mosaic_0001>

<llo_original>
// kernel: conv2d92.1
$region0: #{conv2d92.1}
  #allocation0 [shape = 'u32[]', space=smem, size = 0x4, offset = 0x4, fixed_abs, tag = 'smem constant byte address 0x4 - core index']
  #allocation1 [shape = 'u32[144,128]{1,0:T(1,128)}', space=vmem, size = 0x12000, scoped, tag = 'internal scratch']
  %s0 = inlined_call_operand.vmem [shape: f32[128,196], index: 0, kind: input, shape index: {}]
  %s1 = inlined_call_operand.vmem [shape: f32[288,128], index: 1, kind: input, shape index: {}]
  %s2 = inlined_call_operand.vmem [shape: f32[32,196], index: 2, kind: output, shape index: {}]
  %s3 = sld [smem:[#allocation0]]
  $region18: #{conv2d92.1} parent=0
    _
  %s5 = ssub.s32 1, %s3
  %s6 = scalar_select 0, %s5, %s3
  // Predicated region
  $region2: #{conv2d92.1} parent=0 // pred_check
    _
  $region3: #{conv2d92.1} parent=0 // pred_check_branch
    %8 = sbr.rel (0) target = $region5
  $region4: #{conv2d92.1} parent=0 // pred_region
    _
  $region5: #{conv2d92.1} parent=0 // pred_fallthru
    _
  // Predicated region
  $region6: #{conv2d92.1} parent=0 // pred_check
    _
  $region7: #{conv2d92.1} parent=0 // pred_check_branch
    %10 = sbr.rel (0) target = $region9
  $region8: #{conv2d92.1} parent=0 // pred_region
    _
  $region9: #{conv2d92.1} parent=0 // pred_fallthru
    _
  %v11 = vld [vmem:[%s1] sm:$0xff]
  %v12 = vld [vmem:[%s1 + $0x8] sm:$0xff]
  %v13 = vld [vmem:[%s1 + $0x10] sm:$0xff]
  %v14 = vld [vmem:[%s1 + $0x18] sm:$0xff]
  %v15 = vld [vmem:[%s1 + $0x20] sm:$0xff]
  %v16 = vld [vmem:[%s1 + $0x28] sm:$0xff]
  %v17 = vld [vmem:[%s1 + $0x30] sm:$0xff]
  %v18 = vld [vmem:[%s1 + $0x38] sm:$0xff]
  %v19 = vld [vmem:[%s1 + $0x40] sm:$0xff]
  %v20 = vld [vmem:[%s1 + $0x48] sm:$0xff]
  %v21 = vld [vmem:[%s1 + $0x50] sm:$0xff]
  %v22 = vld [vmem:[%s1 + $0x58] sm:$0xff]
  %v23 = vld [vmem:[%s1 + $0x60] sm:$0xff]
  %v24 = vld [vmem:[%s1 + $0x68] sm:$0xff]
  %v25 = vld [vmem:[%s1 + $0x70] sm:$0xff]
  %v26 = vld [vmem:[%s1 + $0x78] sm:$0xff]
  %v27 = vld [vmem:[%s1 + $0x80] sm:$0xff]
  %v28 = vld [vmem:[%s1 + $0x88] sm:$0xff]
  %v29 = vld [vmem:[%s1 + $0x90] sm:$0xff]
  %v30 = vld [vmem:[%s1 + $0x98] sm:$0xff]
  %v31 = vld [vmem:[%s1 + $0xa0] sm:$0xff]
  %v32 = vld [vmem:[%s1 + $0xa8] sm:$0xff]
  %v33 = vld [vmem:[%s1 + $0xb0] sm:$0xff]
  %v34 = vld [vmem:[%s1 + $0xb8] sm:$0xff]
  %v35 = vld [vmem:[%s1 + $0xc0] sm:$0xff]
  %v36 = vld [vmem:[%s1 + $0xc8] sm:$0xff]
  %v37 = vld [vmem:[%s1 + $0xd0] sm:$0xff]
  %v38 = vld [vmem:[%s1 + $0xd8] sm:$0xff]
  %v39 = vld [vmem:[%s1 + $0xe0] sm:$0xff]
  %v40 = vld [vmem:[%s1 + $0xe8] sm:$0xff]
  %v41 = vld [vmem:[%s1 + $0xf0] sm:$0xff]
  %v42 = vld [vmem:[%s1 + $0xf8] sm:$0xff]
  %v43 = vld [vmem:[%s1 + $0x100] sm:$0xff]
  %v44 = vld [vmem:[%s1 + $0x108] sm:$0xff]
  %v45 = vld [vmem:[%s1 + $0x110] sm:$0xff]
  %v46 = vld [vmem:[%s1 + $0x118] sm:$0xff]
  %v47 = vld [vmem:[%s0] sm:$0xff]
  %v48 = vld [vmem:[%s0 + $0x8] sm:$0xff]
  %v49 = vld [vmem:[%s0 + $0x10] sm:$0xff]
  %v50 = vld [vmem:[%s0 + $0x18] sm:$0xff]
  %v51 = vld [vmem:[%s0 + $0x20] sm:$0xff]
  %v52 = vld [vmem:[%s0 + $0x28] sm:$0xff]
  %v53 = vld [vmem:[%s0 + $0x30] sm:$0xff]
  %v54 = vld [vmem:[%s0 + $0x38] sm:$0xff]
  %v55 = vld [vmem:[%s0 + $0x40] sm:$0xff]
  %v56 = vld [vmem:[%s0 + $0x48] sm:$0xff]
  %v57 = vld [vmem:[%s0 + $0x50] sm:$0xff]
  %v58 = vld [vmem:[%s0 + $0x58] sm:$0xff]
  %v59 = vld [vmem:[%s0 + $0x60] sm:$0xff]
  %v60 = vld [vmem:[%s0 + $0x68] sm:$0xff]
  %v61 = vld [vmem:[%s0 + $0x70] sm:$0xff]
  %v62 = vld [vmem:[%s0 + $0x78] sm:$0xff]
  %v63 = vld [vmem:[%s0 + $0x80] sm:$0xff]
  %v64 = vld [vmem:[%s0 + $0x88] sm:$0xff]
  %v65 = vld [vmem:[%s0 + $0x90] sm:$0xff]
  %v66 = vld [vmem:[%s0 + $0x98] sm:$0xff]
  %v67 = vld [vmem:[%s0 + $0xa0] sm:$0xff]
  %v68 = vld [vmem:[%s0 + $0xa8] sm:$0xff]
  %v69 = vld [vmem:[%s0 + $0xb0] sm:$0xff]
  %v70 = vld [vmem:[%s0 + $0xb8] sm:$0xff]
  %v71 = vld [vmem:[%s0 + $0xc0] sm:$0xff]
  %v72 = vld [vmem:[%s0 + $0xc8] sm:$0xff]
  %v73 = vld [vmem:[%s0 + $0xd0] sm:$0xff]
  %v74 = vld [vmem:[%s0 + $0xd8] sm:$0xff]
  %v75 = vld [vmem:[%s0 + $0xe0] sm:$0xff]
  %v76 = vld [vmem:[%s0 + $0xe8] sm:$0xff]
  %v77 = vld [vmem:[%s0 + $0xf0] sm:$0xff]
  %v78 = vld [vmem:[%s0 + $0xf8] sm:$0xff]
  %79 = vmatprep.subr.mxu0 %v78
  %80 = vmatpush1.msra.mxu0 %v77
  %81 = vmatprep.subr.mxu0 %v76
  %82 = vmatpush1.msra.mxu0 %v75
  %83 = vmatprep.subr.mxu0 %v74
  %84 = vmatpush1.msra.mxu0 %v73
  %85 = vmatprep.subr.mxu0 %v72
  %86 = vmatpush1.msra.mxu0 %v71
  %87 = vmatprep.subr.mxu0 %v70
  %88 = vmatpush1.msra.mxu0 %v69
  %89 = vmatprep.subr.mxu0 %v68
  %90 = vmatpush1.msra.mxu0 %v67
  %91 = vmatprep.subr.mxu0 %v66
  %92 = vmatpush1.msra.mxu0 %v65
  %93 = vmatprep.subr.mxu0 %v64
  %94 = vmatpush1.msra.mxu0 %v63
  %95 = vmatprep.subr.mxu0 %v62
  %96 = vmatpush1.msra.mxu0 %v61
  %97 = vmatprep.subr.mxu0 %v60
  %98 = vmatpush1.msra.mxu0 %v59
  %99 = vmatprep.subr.mxu0 %v58
  %100 = vmatpush1.msra.mxu0 %v57
  %101 = vmatprep.subr.mxu0 %v56
  %102 = vmatpush1.msra.mxu0 %v55
  %103 = vmatprep.subr.mxu0 %v54
  %104 = vmatpush1.msra.mxu0 %v53
  %105 = vmatprep.subr.mxu0 %v52
  %106 = vmatpush1.msra.mxu0 %v51
  %107 = vmatprep.subr.mxu0 %v50
  %108 = vmatpush1.msra.mxu0 %v49
  %109 = vmatprep.subr.mxu0 %v48
  %110 = vmatpush1.msra.mxu0 %v47
  %111 = vmatprep.subr.mxu0 0.0
  %112 = vmatpush2.msra.mxu0 0.0
  %113 = vmatprep.subr.mxu0 0.0
  %114 = vmatpush2.msra.mxu0 0.0
  %115 = vmatprep.subr.mxu0 0.0
  %116 = vmatpush2.msra.mxu0 0.0
  %117 = vmatprep.subr.mxu0 0.0
  %118 = vmatpush2.msra.mxu0 0.0
  %119 = vmatprep.subr.mxu0 0.0
  %120 = vmatpush2.msra.mxu0 0.0
  %121 = vmatprep.subr.mxu0 0.0
  %122 = vmatpush2.msra.mxu0 0.0
  %123 = vmatprep.subr.mxu0 0.0
  %124 = vmatpush2.msra.mxu0 0.0
  %125 = vmatprep.subr.mxu0 0.0
  %126 = vmatpush2.msra.mxu0 0.0
  %127 = vmatprep.subr.mxu0 0.0
  %128 = vmatpush2.msra.mxu0 0.0
  %129 = vmatprep.subr.mxu0 0.0
  %130 = vmatpush2.msra.mxu0 0.0
  %131 = vmatprep.subr.mxu0 0.0
  %132 = vmatpush2.msra.mxu0 0.0
  %133 = vmatprep.subr.mxu0 0.0
  %134 = vmatpush2.msra.mxu0 0.0
  %135 = vmatprep.subr.mxu0 0.0
  %136 = vmatpush2.msra.mxu0 0.0
  %137 = vmatprep.subr.mxu0 0.0
  %138 = vmatpush2.msra.mxu0 0.0
  %139 = vmatprep.subr.mxu0 0.0
  %140 = vmatpush2.msra.mxu0 0.0
  %141 = vmatprep.subr.mxu0 0.0
  %142 = vmatpush2.msra.mxu0 0.0
  %143 = vmatprep.mubr.f32.mxu0 0.0
  %144 = vmatmul.mubr.f32.gmra.mxu0 %v11
  %v145 = vpop.f32.mrf.mxu0
  %v146 = vadd.f32 0.0, %v145
  %v147 = vpop.f32.mrf.mxu0
  %v148 = vadd.f32 0.0, %v147
  %149 = vmatprep.mubr.f32.mxu0 0.0
  %150 = vmatmul.mubr.f32.gmra.mxu0 %v12
  %v151 = vpop.f32.mrf.mxu0
  %v152 = vadd.f32 0.0, %v151
  %v153 = vpop.f32.mrf.mxu0
  %v154 = vadd.f32 0.0, %v153
  %155 = vmatprep.mubr.f32.mxu0 0.0
  %156 = vmatmul.mubr.f32.gmra.mxu0 %v13
  %v157 = vpop.f32.mrf.mxu0
  %v158 = vadd.f32 0.0, %v157
  %v159 = vpop.f32.mrf.mxu0
  %v160 = vadd.f32 0.0, %v159
  %161 = vmatprep.mubr.f32.mxu0 0.0
  %162 = vmatmul.mubr.f32.gmra.mxu0 %v14
  %v163 = vpop.f32.mrf.mxu0
  %v164 = vadd.f32 0.0, %v163
  %v165 = vpop.f32.mrf.mxu0
  %v166 = vadd.f32 0.0, %v165
  %167 = vmatprep.mubr.f32.mxu0 0.0
  %168 = vmatmul.mubr.f32.gmra.mxu0 %v15
  %v169 = vpop.f32.mrf.mxu0
  %v170 = vadd.f32 0.0, %v169
  %v171 = vpop.f32.mrf.mxu0
  %v172 = vadd.f32 0.0, %v171
  %173 = vmatprep.mubr.f32.mxu0 0.0
  %174 = vmatmul.mubr.f32.gmra.mxu0 %v16
  %v175 = vpop.f32.mrf.mxu0
  %v176 = vadd.f32 0.0, %v175
  %v177 = vpop.f32.mrf.mxu0
  %v178 = vadd.f32 0.0, %v177
  %179 = vmatprep.mubr.f32.mxu0 0.0
  %180 = vmatmul.mubr.f32.gmra.mxu0 %v17
  %v181 = vpop.f32.mrf.mxu0
  %v182 = vadd.f32 0.0, %v181
  %v183 = vpop.f32.mrf.mxu0
  %v184 = vadd.f32 0.0, %v183
  %185 = vmatprep.mubr.f32.mxu0 0.0
  %186 = vmatmul.mubr.f32.gmra.mxu0 %v18
  %v187 = vpop.f32.mrf.mxu0
  %v188 = vadd.f32 0.0, %v187
  %v189 = vpop.f32.mrf.mxu0
  %v190 = vadd.f32 0.0, %v189
  %191 = vmatprep.mubr.f32.mxu0 0.0
  %192 = vmatmul.mubr.f32.gmra.mxu0 %v19
  %v193 = vpop.f32.mrf.mxu0
  %v194 = vadd.f32 0.0, %v193
  %v195 = vpop.f32.mrf.mxu0
  %v196 = vadd.f32 0.0, %v195
  %197 = vmatprep.mubr.f32.mxu0 0.0
  %198 = vmatmul.mubr.f32.gmra.mxu0 %v20
  %v199 = vpop.f32.mrf.mxu0
  %v200 = vadd.f32 0.0, %v199
  %v201 = vpop.f32.mrf.mxu0
  %v202 = vadd.f32 0.0, %v201
  %203 = vmatprep.mubr.f32.mxu0 0.0
  %204 = vmatmul.mubr.f32.gmra.mxu0 %v21
  %v205 = vpop.f32.mrf.mxu0
  %v206 = vadd.f32 0.0, %v205
  %v207 = vpop.f32.mrf.mxu0
  %v208 = vadd.f32 0.0, %v207
  %209 = vmatprep.mubr.f32.mxu0 0.0
  %210 = vmatmul.mubr.f32.gmra.mxu0 %v22
  %v211 = vpop.f32.mrf.mxu0
  %v212 = vadd.f32 0.0, %v211
  %v213 = vpop.f32.mrf.mxu0
  %v214 = vadd.f32 0.0, %v213
  %215 = vmatprep.mubr.f32.mxu0 0.0
  %216 = vmatmul.mubr.f32.gmra.mxu0 %v23
  %v217 = vpop.f32.mrf.mxu0
  %v218 = vadd.f32 0.0, %v217
  %v219 = vpop.f32.mrf.mxu0
  %v220 = vadd.f32 0.0, %v219
  %221 = vmatprep.mubr.f32.mxu0 0.0
  %222 = vmatmul.mubr.f32.gmra.mxu0 %v24
  %v223 = vpop.f32.mrf.mxu0
  %v224 = vadd.f32 0.0, %v223
  %v225 = vpop.f32.mrf.mxu0
  %v226 = vadd.f32 0.0, %v225
  %227 = vmatprep.mubr.f32.mxu0 0.0
  %228 = vmatmul.mubr.f32.gmra.mxu0 %v25
  %v229 = vpop.f32.mrf.mxu0
  %v230 = vadd.f32 0.0, %v229
  %v231 = vpop.f32.mrf.mxu0
  %v232 = vadd.f32 0.0, %v231
  %233 = vmatprep.mubr.f32.mxu0 0.0
  %234 = vmatmul.mubr.f32.gmra.mxu0 %v26
  %v235 = vpop.f32.mrf.mxu0
  %v236 = vadd.f32 0.0, %v235
  %v237 = vpop.f32.mrf.mxu0
  %v238 = vadd.f32 0.0, %v237
  %239 = vmatprep.mubr.f32.mxu0 0.0
  %240 = vmatmul.mubr.f32.gmra.mxu0 %v27
  %v241 = vpop.f32.mrf.mxu0
  %v242 = vadd.f32 0.0, %v241
  %v243 = vpop.f32.mrf.mxu0
  %v244 = vadd.f32 0.0, %v243
  %245 = vmatprep.mubr.f32.mxu0 0.0
  %246 = vmatmul.mubr.f32.gmra.mxu0 %v28
  %v247 = vpop.f32.mrf.mxu0
  %v248 = vadd.f32 0.0, %v247
  %v249 = vpop.f32.mrf.mxu0
  %v250 = vadd.f32 0.0, %v249
  %251 = vmatprep.mubr.f32.mxu0 0.0
  %252 = vmatmul.mubr.f32.gmra.mxu0 %v29
  %v253 = vpop.f32.mrf.mxu0
  %v254 = vadd.f32 0.0, %v253
  %v255 = vpop.f32.mrf.mxu0
  %v256 = vadd.f32 0.0, %v255
  %257 = vmatprep.mubr.f32.mxu0 0.0
  %258 = vmatmul.mubr.f32.gmra.mxu0 %v30
  %v259 = vpop.f32.mrf.mxu0
  %v260 = vadd.f32 0.0, %v259
  %v261 = vpop.f32.mrf.mxu0
  %v262 = vadd.f32 0.0, %v261
  %263 = vmatprep.mubr.f32.mxu0 0.0
  %264 = vmatmul.mubr.f32.gmra.mxu0 %v31
  %v265 = vpop.f32.mrf.mxu0
  %v266 = vadd.f32 0.0, %v265
  %v267 = vpop.f32.mrf.mxu0
  %v268 = vadd.f32 0.0, %v267
  %269 = vmatprep.mubr.f32.mxu0 0.0
  %270 = vmatmul.mubr.f32.gmra.mxu0 %v32
  %v271 = vpop.f32.mrf.mxu0
  %v272 = vadd.f32 0.0, %v271
  %v273 = vpop.f32.mrf.mxu0
  %v274 = vadd.f32 0.0, %v273
  %275 = vmatprep.mubr.f32.mxu0 0.0
  %276 = vmatmul.mubr.f32.gmra.mxu0 %v33
  %v277 = vpop.f32.mrf.mxu0
  %v278 = vadd.f32 0.0, %v277
  %v279 = vpop.f32.mrf.mxu0
  %v280 = vadd.f32 0.0, %v279
  %281 = vmatprep.mubr.f32.mxu0 0.0
  %282 = vmatmul.mubr.f32.gmra.mxu0 %v34
  %v283 = vpop.f32.mrf.mxu0
  %v284 = vadd.f32 0.0, %v283
  %v285 = vpop.f32.mrf.mxu0
  %v286 = vadd.f32 0.0, %v285
  %287 = vmatprep.mubr.f32.mxu0 0.0
  %288 = vmatmul.mubr.f32.gmra.mxu0 %v35
  %v289 = vpop.f32.mrf.mxu0
  %v290 = vadd.f32 0.0, %v289
  %v291 = vpop.f32.mrf.mxu0
  %v292 = vadd.f32 0.0, %v291
  %293 = vmatprep.mubr.f32.mxu0 0.0
  %294 = vmatmul.mubr.f32.gmra.mxu0 %v36
  %v295 = vpop.f32.mrf.mxu0
  %v296 = vadd.f32 0.0, %v295
  %v297 = vpop.f32.mrf.mxu0
  %v298 = vadd.f32 0.0, %v297
  %299 = vmatprep.mubr.f32.mxu0 0.0
  %300 = vmatmul.mubr.f32.gmra.mxu0 %v37
  %v301 = vpop.f32.mrf.mxu0
  %v302 = vadd.f32 0.0, %v301
  %v303 = vpop.f32.mrf.mxu0
  %v304 = vadd.f32 0.0, %v303
  %305 = vmatprep.mubr.f32.mxu0 0.0
  %306 = vmatmul.mubr.f32.gmra.mxu0 %v38
  %v307 = vpop.f32.mrf.mxu0
  %v308 = vadd.f32 0.0, %v307
  %v309 = vpop.f32.mrf.mxu0
  %v310 = vadd.f32 0.0, %v309
  %311 = vmatprep.mubr.f32.mxu0 0.0
  %312 = vmatmul.mubr.f32.gmra.mxu0 %v39
  %v313 = vpop.f32.mrf.mxu0
  %v314 = vadd.f32 0.0, %v313
  %v315 = vpop.f32.mrf.mxu0
  %v316 = vadd.f32 0.0, %v315
  %317 = vmatprep.mubr.f32.mxu0 0.0
  %318 = vmatmul.mubr.f32.gmra.mxu0 %v40
  %v319 = vpop.f32.mrf.mxu0
  %v320 = vadd.f32 0.0, %v319
  %v321 = vpop.f32.mrf.mxu0
  %v322 = vadd.f32 0.0, %v321
  %323 = vmatprep.mubr.f32.mxu0 0.0
  %324 = vmatmul.mubr.f32.gmra.mxu0 %v41
  %v325 = vpop.f32.mrf.mxu0
  %v326 = vadd.f32 0.0, %v325
  %v327 = vpop.f32.mrf.mxu0
  %v328 = vadd.f32 0.0, %v327
  %329 = vmatprep.mubr.f32.mxu0 0.0
  %330 = vmatmul.mubr.f32.gmra.mxu0 %v42
  %v331 = vpop.f32.mrf.mxu0
  %v332 = vadd.f32 0.0, %v331
  %v333 = vpop.f32.mrf.mxu0
  %v334 = vadd.f32 0.0, %v333
  %335 = vmatprep.mubr.f32.mxu0 0.0
  %336 = vmatmul.mubr.f32.gmra.mxu0 %v43
  %v337 = vpop.f32.mrf.mxu0
  %v338 = vadd.f32 0.0, %v337
  %v339 = vpop.f32.mrf.mxu0
  %v340 = vadd.f32 0.0, %v339
  %341 = vmatprep.mubr.f32.mxu0 0.0
  %342 = vmatmul.mubr.f32.gmra.mxu0 %v44
  %v343 = vpop.f32.mrf.mxu0
  %v344 = vadd.f32 0.0, %v343
  %v345 = vpop.f32.mrf.mxu0
  %v346 = vadd.f32 0.0, %v345
  %347 = vmatprep.mubr.f32.mxu0 0.0
  %348 = vmatmul.mubr.f32.gmra.mxu0 %v45
  %v349 = vpop.f32.mrf.mxu0
  %v350 = vadd.f32 0.0, %v349
  %v351 = vpop.f32.mrf.mxu0
  %v352 = vadd.f32 0.0, %v351
  %353 = vmatprep.mubr.f32.mxu0 0.0
  %354 = vmatmul.mubr.f32.gmra.mxu0 %v46
  %v355 = vpop.f32.mrf.mxu0
  %v356 = vadd.f32 0.0, %v355
  %v357 = vpop.f32.mrf.mxu0
  %v358 = vadd.f32 0.0, %v357
  %359 = vdwg.mxu0
  %v360 = vlaneseq
  %v361 = vand.u32 %v360, 127
  %v362 = vadd.s32 %v361, 128
  %vm363 = vcmp.lt.s32.totalorder %v361, 0
  %v364 = vsub.s32 0, %v361
  %v365 = vsel %vm363, %v364, %v361
  %v366 = vmul.u32.u64.compose %v365, 2454267026
  %v367 = vextract.low.u32 %v366
  %v368 = vextract.high.u32 %v366
  %vm369 = vc.u32 %v367, 2454267026
  %v370 = vsel %vm369, 1, 0
  %v371 = vadd.s32 %v368, %v370
  %v372 = vshrl.u32 %v371, 3
  %v373 = vmul.u32 %v372, 14
  %v374 = vsub.s32 %v365, %v373
  %v375 = vsub.s32 0, %v374
  %v376 = vsel %vm363, %v375, %v374
  %vm377 = vcmp.lt.s32.totalorder %v362, 0
  %v378 = vsub.s32 0, %v362
  %v379 = vsel %vm377, %v378, %v362
  %v380 = vmul.u32.u64.compose %v379, 2454267026
  %v381 = vextract.low.u32 %v380
  %v382 = vextract.high.u32 %v380
  %vm383 = vc.u32 %v381, 2454267026
  %v384 = vsel %vm383, 1, 0
  %v385 = vadd.s32 %v382, %v384
  %v386 = vshrl.u32 %v385, 3
  %v387 = vmul.u32 %v386, 14
  %v388 = vsub.s32 %v379, %v387
  %v389 = vsub.s32 0, %v388
  %v390 = vsel %vm377, %v389, %v388
  %vm391 = vcmp.ne.s32.totalorder %v376, 0
  %vm392 = vcmp.ne.s32.totalorder %v390, 0
  %vm393 = vcmp.lt.s32.totalorder %v376, 0
  %vm394 = vcmp.lt.s32.totalorder %v390, 0
  %vm395 = vmand %vm393, %vm391
  %vm396 = vmand %vm394, %vm392
  %v397 = vadd.s32 %v376, 14
  %v398 = vadd.s32 %v390, 14
  %v399 = vsel %vm395, %v397, %v376
  %v400 = vsel %vm396, %v398, %v390
  %vm401 = vcmp.ne.s32.totalorder %v399, 0
  %vm402 = vcmp.ne.s32.totalorder %v400, 0
  %vm403 = vcmp.ne.s32.totalorder %v399, 13
  %vm404 = vcmp.ne.s32.totalorder %v400, 13
  %405 = vst [vmem:[%s2] sm:$0xff] 0.0
  %vm406 = vcmask 556032
  %407 = vst.msk [vmem:[%s2 + $0x8] sm:$0xff] %vm406, 0.0
  %408 = vst [vmem:[%s2 + $0x10] sm:$0xff] 0.0
  %409 = vst.msk [vmem:[%s2 + $0x18] sm:$0xff] %vm406, 0.0
  %410 = vst [vmem:[%s2 + $0x20] sm:$0xff] 0.0
  %411 = vst.msk [vmem:[%s2 + $0x28] sm:$0xff] %vm406, 0.0
  %412 = vst [vmem:[%s2 + $0x30] sm:$0xff] 0.0
  %413 = vst.msk [vmem:[%s2 + $0x38] sm:$0xff] %vm406, 0.0
  %v414 = vsel %vm403, %v146, 0.0
  %v415 = vsel %vm404, %v148, 0.0
  %v416 = vsel %vm403, %v152, 0.0
  %v417 = vsel %vm404, %v154, 0.0
  %v418 = vsel %vm403, %v158, 0.0
  %v419 = vsel %vm404, %v160, 0.0
  %v420 = vsel %vm403, %v164, 0.0
  %v421 = vsel %vm404, %v166, 0.0
  %v422 = vld [vmem:[%s2] sm:$0xff]
  %v423 = vld [vmem:[%s2 + $0x8] sm:$0xff]
  %v424 = vld [vmem:[%s2 + $0x10] sm:$0xff]
  %v425 = vld [vmem:[%s2 + $0x18] sm:$0xff]
  %v426 = vld [vmem:[%s2 + $0x20] sm:$0xff]
  %v427 = vld [vmem:[%s2 + $0x28] sm:$0xff]
  %v428 = vld [vmem:[%s2 + $0x30] sm:$0xff]
  %v429 = vld [vmem:[%s2 + $0x38] sm:$0xff]
  %438 = vrot.lane.b32.xlu0 %v414, 15
  %v439 = vpop.permute.xlu0 %438
  %440 = vrot.lane.b32.xlu0 %v415, 15
  %v441 = vpop.permute.xlu0 %440
  %442 = vrot.lane.b32.xlu0 %v416, 15
  %v443 = vpop.permute.xlu0 %442
  %444 = vrot.lane.b32.xlu0 %v417, 15
  %v445 = vpop.permute.xlu0 %444
  %446 = vrot.lane.b32.xlu0 %v418, 15
  %v447 = vpop.permute.xlu0 %446
  %448 = vrot.lane.b32.xlu0 %v419, 15
  %v449 = vpop.permute.xlu0 %448
  %450 = vrot.lane.b32.xlu0 %v420, 15
  %v451 = vpop.permute.xlu0 %450
  %452 = vrot.lane.b32.xlu0 %v421, 15
  %v453 = vpop.permute.xlu0 %452
  %vm454 = vcmask 121856
  %v455 = vsel %vm454, %v439, %v441
  %v456 = vsel %vm454, %v443, %v445
  %v457 = vsel %vm454, %v447, %v449
  %v458 = vsel %vm454, %v451, %v453
  %v467 = vadd.f32 %v422, %v439
  %v468 = vadd.f32 %v423, %v455
  %v469 = vadd.f32 %v424, %v443
  %v470 = vadd.f32 %v425, %v456
  %v471 = vadd.f32 %v426, %v447
  %v472 = vadd.f32 %v427, %v457
  %v473 = vadd.f32 %v428, %v451
  %v474 = vadd.f32 %v429, %v458
  %vm475 = vcmask 1047672
  %476 = vst.msk [vmem:[%s2] sm:$0xff] %vm475, %v467
  %477 = vst.msk [vmem:[%s2 + $0x8] sm:$0xff] %vm406, %v468
  %478 = vst.msk [vmem:[%s2 + $0x10] sm:$0xff] %vm475, %v469
  %479 = vst.msk [vmem:[%s2 + $0x18] sm:$0xff] %vm406, %v470
  %480 = vst.msk [vmem:[%s2 + $0x20] sm:$0xff] %vm475, %v471
  %481 = vst.msk [vmem:[%s2 + $0x28] sm:$0xff] %vm406, %v472
  %482 = vst.msk [vmem:[%s2 + $0x30] sm:$0xff] %vm475, %v473
  %483 = vst.msk [vmem:[%s2 + $0x38] sm:$0xff] %vm406, %v474
  %v484 = vld [vmem:[%s2] sm:$0xff]
  %v485 = vld [vmem:[%s2 + $0x8] sm:$0xff]
  %v486 = vld [vmem:[%s2 + $0x10] sm:$0xff]
  %v487 = vld [vmem:[%s2 + $0x18] sm:$0xff]
  %v488 = vld [vmem:[%s2 + $0x20] sm:$0xff]
  %v489 = vld [vmem:[%s2 + $0x28] sm:$0xff]
  %v490 = vld [vmem:[%s2 + $0x30] sm:$0xff]
  %v491 = vld [vmem:[%s2 + $0x38] sm:$0xff]
  %500 = vrot.lane.b32.xlu0 %v170, 14
  %v501 = vpop.permute.xlu0 %500
  %502 = vrot.lane.b32.xlu0 %v172, 14
  %v503 = vpop.permute.xlu0 %502
  %504 = vrot.lane.b32.xlu0 %v176, 14
  %v505 = vpop.permute.xlu0 %504
  %506 = vrot.lane.b32.xlu0 %v178, 14
  %v507 = vpop.permute.xlu0 %506
  %508 = vrot.lane.b32.xlu0 %v182, 14
  %v509 = vpop.permute.xlu0 %508
  %510 = vrot.lane.b32.xlu0 %v184, 14
  %v511 = vpop.permute.xlu0 %510
  %512 = vrot.lane.b32.xlu0 %v188, 14
  %v513 = vpop.permute.xlu0 %512
  %514 = vrot.lane.b32.xlu0 %v190, 14
  %v515 = vpop.permute.xlu0 %514
  %vm516 = vcmask 113664
  %v517 = vsel %vm516, %v501, %v503
  %v518 = vsel %vm516, %v505, %v507
  %v519 = vsel %vm516, %v509, %v511
  %v520 = vsel %vm516, %v513, %v515
  %v529 = vadd.f32 %v484, %v501
  %v530 = vadd.f32 %v485, %v517
  %v531 = vadd.f32 %v486, %v505
  %v532 = vadd.f32 %v487, %v518
  %v533 = vadd.f32 %v488, %v509
  %v534 = vadd.f32 %v489, %v519
  %v535 = vadd.f32 %v490, %v513
  %v536 = vadd.f32 %v491, %v520
  %vm537 = vcmask 1047664
  %538 = vst.msk [vmem:[%s2] sm:$0xff] %vm537, %v529
  %539 = vst.msk [vmem:[%s2 + $0x8] sm:$0xff] %vm406, %v530
  %540 = vst.msk [vmem:[%s2 + $0x10] sm:$0xff] %vm537, %v531
  %541 = vst.msk [vmem:[%s2 + $0x18] sm:$0xff] %vm406, %v532
  %542 = vst.msk [vmem:[%s2 + $0x20] sm:$0xff] %vm537, %v533
  %543 = vst.msk [vmem:[%s2 + $0x28] sm:$0xff] %vm406, %v534
  %544 = vst.msk [vmem:[%s2 + $0x30] sm:$0xff] %vm537, %v535
  %545 = vst.msk [vmem:[%s2 + $0x38] sm:$0xff] %vm406, %v536
  %v546 = vsel %vm401, %v194, 0.0
  %v547 = vsel %vm402, %v196, 0.0
  %v548 = vsel %vm401, %v200, 0.0
  %v549 = vsel %vm402, %v202, 0.0
  %v550 = vsel %vm401, %v206, 0.0
  %v551 = vsel %vm402, %v208, 0.0
  %v552 = vsel %vm401, %v212, 0.0
  %v553 = vsel %vm402, %v214, 0.0
  %v554 = vld [vmem:[%s2] sm:$0xff]
  %v555 = vld [vmem:[%s2 + $0x8] sm:$0xff]
  %v556 = vld [vmem:[%s2 + $0x10] sm:$0xff]
  %v557 = vld [vmem:[%s2 + $0x18] sm:$0xff]
  %v558 = vld [vmem:[%s2 + $0x20] sm:$0xff]
  %v559 = vld [vmem:[%s2 + $0x28] sm:$0xff]
  %v560 = vld [vmem:[%s2 + $0x30] sm:$0xff]
  %v561 = vld [vmem:[%s2 + $0x38] sm:$0xff]
  %570 = vrot.lane.b32.xlu0 %v546, 13
  %v571 = vpop.permute.xlu0 %570
  %572 = vrot.lane.b32.xlu0 %v547, 13
  %v573 = vpop.permute.xlu0 %572
  %574 = vrot.lane.b32.xlu0 %v548, 13
  %v575 = vpop.permute.xlu0 %574
  %576 = vrot.lane.b32.xlu0 %v549, 13
  %v577 = vpop.permute.xlu0 %576
  %578 = vrot.lane.b32.xlu0 %v550, 13
  %v579 = vpop.permute.xlu0 %578
  %580 = vrot.lane.b32.xlu0 %v551, 13
  %v581 = vpop.permute.xlu0 %580
  %582 = vrot.lane.b32.xlu0 %v552, 13
  %v583 = vpop.permute.xlu0 %582
  %584 = vrot.lane.b32.xlu0 %v553, 13
  %v585 = vpop.permute.xlu0 %584
  %vm586 = vcmask 105472
  %v587 = vsel %vm586, %v571, %v573
  %v588 = vsel %vm586, %v575, %v577
  %v589 = vsel %vm586, %v579, %v581
  %v590 = vsel %vm586, %v583, %v585
  %v599 = vadd.f32 %v554, %v571
  %v600 = vadd.f32 %v555, %v587
  %v601 = vadd.f32 %v556, %v575
  %v602 = vadd.f32 %v557, %v588
  %v603 = vadd.f32 %v558, %v579
  %v604 = vadd.f32 %v559, %v589
  %v605 = vadd.f32 %v560, %v583
  %v606 = vadd.f32 %v561, %v590
  %vm607 = vcmask 1047656
  %608 = vst.msk [vmem:[%s2] sm:$0xff] %vm607, %v599
  %609 = vst.msk [vmem:[%s2 + $0x8] sm:$0xff] %vm406, %v600
  %610 = vst.msk [vmem:[%s2 + $0x10] sm:$0xff] %vm607, %v601
  %611 = vst.msk [vmem:[%s2 + $0x18] sm:$0xff] %vm406, %v602
  %612 = vst.msk [vmem:[%s2 + $0x20] sm:$0xff] %vm607, %v603
  %613 = vst.msk [vmem:[%s2 + $0x28] sm:$0xff] %vm406, %v604
  %614 = vst.msk [vmem:[%s2 + $0x30] sm:$0xff] %vm607, %v605
  %615 = vst.msk [vmem:[%s2 + $0x38] sm:$0xff] %vm406, %v606
  %v616 = vsel %vm403, %v218, 0.0
  %v617 = vsel %vm404, %v220, 0.0
  %v618 = vsel %vm403, %v224, 0.0
  %v619 = vsel %vm404, %v226, 0.0
  %v620 = vsel %vm403, %v230, 0.0
  %v621 = vsel %vm404, %v232, 0.0
  %v622 = vsel %vm403, %v236, 0.0
  %v623 = vsel %vm404, %v238, 0.0
  %v624 = vld [vmem:[%s2] sm:$0xff]
  %v625 = vld [vmem:[%s2 + $0x8] sm:$0xff]
  %v626 = vld [vmem:[%s2 + $0x10] sm:$0xff]
  %v627 = vld [vmem:[%s2 + $0x18] sm:$0xff]
  %v628 = vld [vmem:[%s2 + $0x20] sm:$0xff]
  %v629 = vld [vmem:[%s2 + $0x28] sm:$0xff]
  %v630 = vld [vmem:[%s2 + $0x30] sm:$0xff]
  %v631 = vld [vmem:[%s2 + $0x38] sm:$0xff]
  %640 = vrot.lane.b32.xlu0 %v616, 1
  %v641 = vpop.permute.xlu0 %640
  %642 = vrot.lane.b32.xlu0 %v617, 1
  %v643 = vpop.permute.xlu0 %642
  %644 = vrot.lane.b32.xlu0 %v618, 1
  %v645 = vpop.permute.xlu0 %644
  %646 = vrot.lane.b32.xlu0 %v619, 1
  %v647 = vpop.permute.xlu0 %646
  %648 = vrot.lane.b32.xlu0 %v620, 1
  %v649 = vpop.permute.xlu0 %648
  %650 = vrot.lane.b32.xlu0 %v621, 1
  %v651 = vpop.permute.xlu0 %650
  %652 = vrot.lane.b32.xlu0 %v622, 1
  %v653 = vpop.permute.xlu0 %652
  %654 = vrot.lane.b32.xlu0 %v623, 1
  %v655 = vpop.permute.xlu0 %654
  %vm656 = vcmask 7168
  %v657 = vsel %vm656, %v641, %v643
  %v658 = vsel %vm656, %v645, %v647
  %v659 = vsel %vm656, %v649, %v651
  %v660 = vsel %vm656, %v653, %v655
  %v669 = vadd.f32 %v624, %v641
  %v670 = vadd.f32 %v625, %v657
  %v671 = vadd.f32 %v626, %v645
  %v672 = vadd.f32 %v627, %v658
  %v673 = vadd.f32 %v628, %v649
  %v674 = vadd.f32 %v629, %v659
  %v675 = vadd.f32 %v630, %v653
  %v676 = vadd.f32 %v631, %v660
  %vm677 = vcmask 1047560
  %678 = vst.msk [vmem:[%s2] sm:$0xff] %vm677, %v669
  %679 = vst.msk [vmem:[%s2 + $0x8] sm:$0xff] %vm406, %v670
  %680 = vst.msk [vmem:[%s2 + $0x10] sm:$0xff] %vm677, %v671
  %681 = vst.msk [vmem:[%s2 + $0x18] sm:$0xff] %vm406, %v672
  %682 = vst.msk [vmem:[%s2 + $0x20] sm:$0xff] %vm677, %v673
  %683 = vst.msk [vmem:[%s2 + $0x28] sm:$0xff] %vm406, %v674
  %684 = vst.msk [vmem:[%s2 + $0x30] sm:$0xff] %vm677, %v675
  %685 = vst.msk [vmem:[%s2 + $0x38] sm:$0xff] %vm406, %v676
  %v686 = vld [vmem:[%s2] sm:$0xff]
  %v687 = vld [vmem:[%s2 + $0x8] sm:$0xff]
  %v688 = vld [vmem:[%s2 + $0x10] sm:$0xff]
  %v689 = vld [vmem:[%s2 + $0x18] sm:$0xff]
  %v690 = vld [vmem:[%s2 + $0x20] sm:$0xff]
  %v691 = vld [vmem:[%s2 + $0x28] sm:$0xff]
  %v692 = vld [vmem:[%s2 + $0x30] sm:$0xff]
  %v693 = vld [vmem:[%s2 + $0x38] sm:$0xff]
  %v694 = vadd.f32 %v686, %v242
  %v695 = vadd.f32 %v687, %v244
  %v696 = vadd.f32 %v688, %v248
  %v697 = vadd.f32 %v689, %v250
  %v698 = vadd.f32 %v690, %v254
  %v699 = vadd.f32 %v691, %v256
  %v700 = vadd.f32 %v692, %v260
  %v701 = vadd.f32 %v693, %v262
  %702 = vst [vmem:[%s2] sm:$0xff] %v694
  %703 = vst.msk [vmem:[%s2 + $0x8] sm:$0xff] %vm406, %v695
  %704 = vst [vmem:[%s2 + $0x10] sm:$0xff] %v696
  %705 = vst.msk [vmem:[%s2 + $0x18] sm:$0xff] %vm406, %v697
  %706 = vst [vmem:[%s2 + $0x20] sm:$0xff] %v698
  %707 = vst.msk [vmem:[%s2 + $0x28] sm:$0xff] %vm406, %v699
  %708 = vst [vmem:[%s2 + $0x30] sm:$0xff] %v700
  %709 = vst.msk [vmem:[%s2 + $0x38] sm:$0xff] %vm406, %v701
  %v710 = vsel %vm401, %v266, 0.0
  %v711 = vsel %vm402, %v268, 0.0
  %v712 = vsel %vm401, %v272, 0.0
  %v713 = vsel %vm402, %v274, 0.0
  %v714 = vsel %vm401, %v278, 0.0
  %v715 = vsel %vm402, %v280, 0.0
  %v716 = vsel %vm401, %v284, 0.0
  %v717 = vsel %vm402, %v286, 0.0
  %v718 = vld [vmem:[%s2] sm:$0xff]
  %v719 = vld [vmem:[%s2 + $0x8] sm:$0xff]
  %v720 = vld [vmem:[%s2 + $0x10] sm:$0xff]
  %v721 = vld [vmem:[%s2 + $0x18] sm:$0xff]
  %v722 = vld [vmem:[%s2 + $0x20] sm:$0xff]
  %v723 = vld [vmem:[%s2 + $0x28] sm:$0xff]
  %v724 = vld [vmem:[%s2 + $0x30] sm:$0xff]
  %v725 = vld [vmem:[%s2 + $0x38] sm:$0xff]
  %734 = vrot.lane.b32.xlu0 %v710, 127
  %v735 = vpop.permute.xlu0 %734
  %736 = vrot.lane.b32.xlu0 %v711, 127
  %v737 = vpop.permute.xlu0 %736
  %738 = vrot.lane.b32.xlu0 %v712, 127
  %v739 = vpop.permute.xlu0 %738
  %740 = vrot.lane.b32.xlu0 %v713, 127
  %v741 = vpop.permute.xlu0 %740
  %742 = vrot.lane.b32.xlu0 %v714, 127
  %v743 = vpop.permute.xlu0 %742
  %744 = vrot.lane.b32.xlu0 %v715, 127
  %v745 = vpop.permute.xlu0 %744
  %746 = vrot.lane.b32.xlu0 %v716, 127
  %v747 = vpop.permute.xlu0 %746
  %748 = vrot.lane.b32.xlu0 %v717, 127
  %v749 = vpop.permute.xlu0 %748
  %vm750 = vcmask 1039360
  %v751 = vsel %vm750, %v735, %v737
  %v752 = vsel %vm750, %v739, %v741
  %v753 = vsel %vm750, %v743, %v745
  %v754 = vsel %vm750, %v747, %v749
  %v763 = vadd.f32 %v718, %v751
  %v764 = vadd.f32 %v719, %v737
  %v765 = vadd.f32 %v720, %v752
  %v766 = vadd.f32 %v721, %v741
  %v767 = vadd.f32 %v722, %v753
  %v768 = vadd.f32 %v723, %v745
  %v769 = vadd.f32 %v724, %v754
  %v770 = vadd.f32 %v725, %v749
  %771 = vst [vmem:[%s2] sm:$0xff] %v763
  %vm772 = vcmask 547840
  %773 = vst.msk [vmem:[%s2 + $0x8] sm:$0xff] %vm772, %v764
  %774 = vst [vmem:[%s2 + $0x10] sm:$0xff] %v765
  %775 = vst.msk [vmem:[%s2 + $0x18] sm:$0xff] %vm772, %v766
  %776 = vst [vmem:[%s2 + $0x20] sm:$0xff] %v767
  %777 = vst.msk [vmem:[%s2 + $0x28] sm:$0xff] %vm772, %v768
  %778 = vst [vmem:[%s2 + $0x30] sm:$0xff] %v769
  %779 = vst.msk [vmem:[%s2 + $0x38] sm:$0xff] %vm772, %v770
  %v780 = vsel %vm403, %v290, 0.0
  %v781 = vsel %vm404, %v292, 0.0
  %v782 = vsel %vm403, %v296, 0.0
  %v783 = vsel %vm404, %v298, 0.0
  %v784 = vsel %vm403, %v302, 0.0
  %v785 = vsel %vm404, %v304, 0.0
  %v786 = vsel %vm403, %v308, 0.0
  %v787 = vsel %vm404, %v310, 0.0
  %v788 = vld [vmem:[%s2] sm:$0xff]
  %v789 = vld [vmem:[%s2 + $0x8] sm:$0xff]
  %v790 = vld [vmem:[%s2 + $0x10] sm:$0xff]
  %v791 = vld [vmem:[%s2 + $0x18] sm:$0xff]
  %v792 = vld [vmem:[%s2 + $0x20] sm:$0xff]
  %v793 = vld [vmem:[%s2 + $0x28] sm:$0xff]
  %v794 = vld [vmem:[%s2 + $0x30] sm:$0xff]
  %v795 = vld [vmem:[%s2 + $0x38] sm:$0xff]
  %804 = vrot.lane.b32.xlu0 %v780, 115
  %v805 = vpop.permute.xlu0 %804
  %806 = vrot.lane.b32.xlu0 %v781, 115
  %v807 = vpop.permute.xlu0 %806
  %808 = vrot.lane.b32.xlu0 %v782, 115
  %v809 = vpop.permute.xlu0 %808
  %810 = vrot.lane.b32.xlu0 %v783, 115
  %v811 = vpop.permute.xlu0 %810
  %812 = vrot.lane.b32.xlu0 %v784, 115
  %v813 = vpop.permute.xlu0 %812
  %814 = vrot.lane.b32.xlu0 %v785, 115
  %v815 = vpop.permute.xlu0 %814
  %816 = vrot.lane.b32.xlu0 %v786, 115
  %v817 = vpop.permute.xlu0 %816
  %818 = vrot.lane.b32.xlu0 %v787, 115
  %v819 = vpop.permute.xlu0 %818
  %vm820 = vcmask 941056
  %v821 = vsel %vm820, %v805, %v807
  %v822 = vsel %vm820, %v809, %v811
  %v823 = vsel %vm820, %v813, %v815
  %v824 = vsel %vm820, %v817, %v819
  %v833 = vadd.f32 %v788, %v821
  %v834 = vadd.f32 %v789, %v807
  %v835 = vadd.f32 %v790, %v822
  %v836 = vadd.f32 %v791, %v811
  %v837 = vadd.f32 %v792, %v823
  %v838 = vadd.f32 %v793, %v815
  %v839 = vadd.f32 %v794, %v824
  %v840 = vadd.f32 %v795, %v819
  %841 = vst [vmem:[%s2] sm:$0xff] %v833
  %vm842 = vcmask 449536
  %843 = vst.msk [vmem:[%s2 + $0x8] sm:$0xff] %vm842, %v834
  %844 = vst [vmem:[%s2 + $0x10] sm:$0xff] %v835
  %845 = vst.msk [vmem:[%s2 + $0x18] sm:$0xff] %vm842, %v836
  %846 = vst [vmem:[%s2 + $0x20] sm:$0xff] %v837
  %847 = vst.msk [vmem:[%s2 + $0x28] sm:$0xff] %vm842, %v838
  %848 = vst [vmem:[%s2 + $0x30] sm:$0xff] %v839
  %849 = vst.msk [vmem:[%s2 + $0x38] sm:$0xff] %vm842, %v840
  %v850 = vld [vmem:[%s2] sm:$0xff]
  %v851 = vld [vmem:[%s2 + $0x8] sm:$0xff]
  %v852 = vld [vmem:[%s2 + $0x10] sm:$0xff]
  %v853 = vld [vmem:[%s2 + $0x18] sm:$0xff]
  %v854 = vld [vmem:[%s2 + $0x20] sm:$0xff]
  %v855 = vld [vmem:[%s2 + $0x28] sm:$0xff]
  %v856 = vld [vmem:[%s2 + $0x30] sm:$0xff]
  %v857 = vld [vmem:[%s2 + $0x38] sm:$0xff]
  %866 = vrot.lane.b32.xlu0 %v314, 114
  %v867 = vpop.permute.xlu0 %866
  %868 = vrot.lane.b32.xlu0 %v316, 114
  %v869 = vpop.permute.xlu0 %868
  %870 = vrot.lane.b32.xlu0 %v320, 114
  %v871 = vpop.permute.xlu0 %870
  %872 = vrot.lane.b32.xlu0 %v322, 114
  %v873 = vpop.permute.xlu0 %872
  %874 = vrot.lane.b32.xlu0 %v326, 114
  %v875 = vpop.permute.xlu0 %874
  %876 = vrot.lane.b32.xlu0 %v328, 114
  %v877 = vpop.permute.xlu0 %876
  %878 = vrot.lane.b32.xlu0 %v332, 114
  %v879 = vpop.permute.xlu0 %878
  %880 = vrot.lane.b32.xlu0 %v334, 114
  %v881 = vpop.permute.xlu0 %880
  %vm882 = vcmask 932864
  %v883 = vsel %vm882, %v867, %v869
  %v884 = vsel %vm882, %v871, %v873
  %v885 = vsel %vm882, %v875, %v877
  %v886 = vsel %vm882, %v879, %v881
  %v895 = vadd.f32 %v850, %v883
  %v896 = vadd.f32 %v851, %v869
  %v897 = vadd.f32 %v852, %v884
  %v898 = vadd.f32 %v853, %v873
  %v899 = vadd.f32 %v854, %v885
  %v900 = vadd.f32 %v855, %v877
  %v901 = vadd.f32 %v856, %v886
  %v902 = vadd.f32 %v857, %v881
  %903 = vst [vmem:[%s2] sm:$0xff] %v895
  %vm904 = vcmask 441344
  %905 = vst.msk [vmem:[%s2 + $0x8] sm:$0xff] %vm904, %v896
  %906 = vst [vmem:[%s2 + $0x10] sm:$0xff] %v897
  %907 = vst.msk [vmem:[%s2 + $0x18] sm:$0xff] %vm904, %v898
  %908 = vst [vmem:[%s2 + $0x20] sm:$0xff] %v899
  %909 = vst.msk [vmem:[%s2 + $0x28] sm:$0xff] %vm904, %v900
  %910 = vst [vmem:[%s2 + $0x30] sm:$0xff] %v901
  %911 = vst.msk [vmem:[%s2 + $0x38] sm:$0xff] %vm904, %v902
  %v912 = vsel %vm401, %v338, 0.0
  %v913 = vsel %vm402, %v340, 0.0
  %v914 = vsel %vm401, %v344, 0.0
  %v915 = vsel %vm402, %v346, 0.0
  %v916 = vsel %vm401, %v350, 0.0
  %v917 = vsel %vm402, %v352, 0.0
  %v918 = vsel %vm401, %v356, 0.0
  %v919 = vsel %vm402, %v358, 0.0
  %v920 = vld [vmem:[%s2] sm:$0xff]
  %v921 = vld [vmem:[%s2 + $0x8] sm:$0xff]
  %v922 = vld [vmem:[%s2 + $0x10] sm:$0xff]
  %v923 = vld [vmem:[%s2 + $0x18] sm:$0xff]
  %v924 = vld [vmem:[%s2 + $0x20] sm:$0xff]
  %v925 = vld [vmem:[%s2 + $0x28] sm:$0xff]
  %v926 = vld [vmem:[%s2 + $0x30] sm:$0xff]
  %v927 = vld [vmem:[%s2 + $0x38] sm:$0xff]
  %936 = vrot.lane.b32.xlu0 %v912, 113
  %v937 = vpop.permute.xlu0 %936
  %938 = vrot.lane.b32.xlu0 %v913, 113
  %v939 = vpop.permute.xlu0 %938
  %940 = vrot.lane.b32.xlu0 %v914, 113
  %v941 = vpop.permute.xlu0 %940
  %942 = vrot.lane.b32.xlu0 %v915, 113
  %v943 = vpop.permute.xlu0 %942
  %944 = vrot.lane.b32.xlu0 %v916, 113
  %v945 = vpop.permute.xlu0 %944
  %946 = vrot.lane.b32.xlu0 %v917, 113
  %v947 = vpop.permute.xlu0 %946
  %948 = vrot.lane.b32.xlu0 %v918, 113
  %v949 = vpop.permute.xlu0 %948
  %950 = vrot.lane.b32.xlu0 %v919, 113
  %v951 = vpop.permute.xlu0 %950
  %vm952 = vcmask 924672
  %v953 = vsel %vm952, %v937, %v939
  %v954 = vsel %vm952, %v941, %v943
  %v955 = vsel %vm952, %v945, %v947
  %v956 = vsel %vm952, %v949, %v951
  %v965 = vadd.f32 %v920, %v953
  %v966 = vadd.f32 %v921, %v939
  %v967 = vadd.f32 %v922, %v954
  %v968 = vadd.f32 %v923, %v943
  %v969 = vadd.f32 %v924, %v955
  %v970 = vadd.f32 %v925, %v947
  %v971 = vadd.f32 %v926, %v956
  %v972 = vadd.f32 %v927, %v951
  %973 = vst [vmem:[%s2] sm:$0xff] %v965
  %vm974 = vcmask 433152
  %975 = vst.msk [vmem:[%s2 + $0x8] sm:$0xff] %vm974, %v966
  %976 = vst [vmem:[%s2 + $0x10] sm:$0xff] %v967
  %977 = vst.msk [vmem:[%s2 + $0x18] sm:$0xff] %vm974, %v968
  %978 = vst [vmem:[%s2 + $0x20] sm:$0xff] %v969
  %979 = vst.msk [vmem:[%s2 + $0x28] sm:$0xff] %vm974, %v970
  %980 = vst [vmem:[%s2 + $0x30] sm:$0xff] %v971
  %981 = vst.msk [vmem:[%s2 + $0x38] sm:$0xff] %vm974, %v972
  // Predicated region
  $region10: #{conv2d92.1} parent=0 // pred_check
    _
  $region11: #{conv2d92.1} parent=0 // pred_check_branch
    %983 = sbr.rel (0) target = $region13
  $region12: #{conv2d92.1} parent=0 // pred_region
    _
  $region13: #{conv2d92.1} parent=0 // pred_fallthru
    _
  // Predicated region
  $region14: #{conv2d92.1} parent=0 // pred_check
    _
  $region15: #{conv2d92.1} parent=0 // pred_check_branch
    %985 = sbr.rel (0) target = $region17
  $region16: #{conv2d92.1} parent=0 // pred_region
    _
  $region17: #{conv2d92.1} parent=0 // pred_fallthru
    _

</llo_original>
